<compile_context>
chip_gen: v6e
topology: v6e:2x2x1
jax: 0.10.0
libtpu: 0.0.40
codegen_flags: <defaults>
</compile_context>

<pallas_src>
import jax
import jax.numpy as jnp
from jax.experimental import pallas as pl
from jax.experimental.pallas import tpu as pltpu

# ImageNet normalization constants (from the module's __init__).
_MEAN = (0.485, 0.456, 0.406)
_STD = (0.229, 0.224, 0.225)

# batch_tile * lane_tile element budget per grid step.  With f32 data the
# double-buffered VMEM working set stays <= ~24 MiB in the worst padding case.
_ELEMS_PER_STEP = 262144
_LANE_CAP = _ELEMS_PER_STEP
_VMEM_LIMIT_BYTES = 32 * 1024 * 1024  # headroom over v5e's 16 MiB default scope


def _normalize_kernel(mean_ref, inv_std_ref, x_ref, o_ref):
    # mean_ref, inv_std_ref: SMEM float32[3]
    # x_ref: VMEM (bt, L)    single-channel pixel tile (L = lane tile of H*W)
    # o_ref: VMEM (bt, 3, L) all three normalized output channels
    x = x_ref[...]  # load the input tile once; reused for all 3 channels
    for c in range(3):  # static unroll over RGB
        y = ((x - mean_ref[c]) * inv_std_ref[c]).astype(o_ref.dtype)
        o_ref[:, c : c + 1, :] = y[:, None, :]


def _pick_tiles(n, hw):
    """Return (batch_tile, lane_tile): sublane-legal, lane-dense, VMEM-bounded."""
    # --- lane tile along the flattened H*W axis ---
    if hw % 128 != 0:
        # TODO(synk): tile non-128-multiple spatial sizes with a masked lane tail
        # (very large odd H*W will use one full-width block here).
        lane_tile = hw
    elif hw <= _LANE_CAP:
        lane_tile = hw
    else:
        lane_tile = (_LANE_CAP // 128) * 128
        while hw % lane_tile:
            lane_tile -= 128

    # --- batch tile: multiple of 8 (sublane tile) or the whole batch ---
    budget = max(1, _ELEMS_PER_STEP // max(lane_tile, 128))
    if budget >= n:
        bt = n
    elif budget >= 8:
        bt = (budget // 8) * 8
    else:
        bt = 8 if n >= 8 else n
        if hw % 128 == 0:
            # shrink the lane tile so bt * lane_tile stays within budget
            lane_tile = max(128, ((_ELEMS_PER_STEP // bt) // 128) * 128)
            while hw % lane_tile:
                lane_tile -= 128
    return bt, lane_tile


def resnet_image_forward(x, mean=_MEAN, std=_STD, *, out_dtype=None):
    """x: [N, 1, H, W] -> [N, 3, H, W]  (repeat channel to 3 then normalize).

    out_dtype: optionally emit bf16 to halve the dominant output HBM traffic
    when the downstream ResNet consumes bf16 (default: same dtype as x).
    """
    N, C, H, W = x.shape
    assert C == 1, "ResnetImage expects a single-channel input (repeated to 3)"

    mean = jnp.asarray(mean, jnp.float32)
    std = jnp.asarray(std, jnp.float32)
    assert mean.shape == (3,) and std.shape == (3,), "mean/std must have 3 channels"
    inv_std = 1.0 / std  # precomputed; no per-step scalar divide in the kernel

    out_dtype = x.dtype if out_dtype is None else out_dtype

    HW = H * W
    x2 = x.reshape(N, HW)  # dense 2-D view; free reshape (contiguous)

    batch_tile, lane_tile = _pick_tiles(N, HW)
    grid = (pl.cdiv(N, batch_tile), pl.cdiv(HW, lane_tile))

    out_flat = pl.pallas_call(
        _normalize_kernel,
        out_shape=jax.ShapeDtypeStruct((N, 3, HW), out_dtype),
        grid=grid,
        in_specs=[
            pl.BlockSpec(memory_space=pltpu.SMEM),  # mean[3]
            pl.BlockSpec(memory_space=pltpu.SMEM),  # 1/std[3]
            pl.BlockSpec((batch_tile, lane_tile), lambda n, l: (n, l)),
        ],
        out_specs=pl.BlockSpec((batch_tile, 3, lane_tile), lambda n, l: (n, 0, l)),
        compiler_params=pltpu.CompilerParams(
            dimension_semantics=("parallel", "parallel"),
            vmem_limit_bytes=_VMEM_LIMIT_BYTES,
        ),
    )(mean, inv_std, x2)

    return out_flat.reshape(N, 3, H, W)


if __name__ == "__main__":
    key = jax.random.PRNGKey(0)
    # Small shapes consistent with the module: batch=2, single channel, 16x16.
    x = jax.random.uniform(key, (2, 1, 16, 16), dtype=jnp.float32)

    out = resnet_image_forward(x)
    out = jax.block_until_ready(out)

    # Reference: repeat channel to 3, then normalize (same as torchvision).
    mean = jnp.array(_MEAN, dtype=jnp.float32)
    std = jnp.array(_STD, dtype=jnp.float32)
    ref = (jnp.repeat(x, 3, axis=1) - mean[None, :, None, None]) / std[None, :, None, None]

    assert out.shape == (2, 3, 16, 16)
    # Kernel multiplies by a precomputed 1/std (a couple of ulps vs true divide).
    assert jnp.allclose(out, ref, atol=1e-5, rtol=1e-5), "mismatch vs reference"

    print("KERNEL_OK")
</pallas_src>

<mosaic_0001>
module attributes {stable_mosaic.version = 11 : i64} {
  func.func @_normalize_kernel(%arg0: i32, %arg1: i32, %arg2: memref<3xf32, #tpu.memory_space<smem>>, %arg3: memref<3xf32, #tpu.memory_space<smem>>, %arg4: memref<2x256xf32, #tpu.memory_space<vmem>>, %arg5: memref<2x3x256xf32, #tpu.memory_space<vmem>>) attributes {dimension_semantics = [#tpu.dimension_semantics<parallel>, #tpu.dimension_semantics<parallel>], iteration_bounds = array<i64: 1, 1>, scalar_prefetch = 0 : i64, scratch_operands = 0 : i64, tpu.core_type = #tpu.core_type<tc>, window_params = [{transform_indices = @transform_0, window_bounds = array<i64: 3>}, {transform_indices = @transform_1, window_bounds = array<i64: 3>}, {transform_indices = @transform_2, window_bounds = array<i64: 2, 256>}, {transform_indices = @transform_3, window_bounds = array<i64: 2, 3, 256>}]} {
    %c0 = arith.constant 0 : index
    %c0_0 = arith.constant 0 : index
    %0 = vector.load %arg4[%c0, %c0_0] : memref<2x256xf32, #tpu.memory_space<vmem>>, vector<2x256xf32>
    %c0_1 = arith.constant 0 : index
    %1 = memref.load %arg2[%c0_1] : memref<3xf32, #tpu.memory_space<smem>>
    %2 = vector.broadcast %1 : f32 to vector<2x256xf32>
    %3 = arith.subf %0, %2 : vector<2x256xf32>
    %c0_2 = arith.constant 0 : index
    %4 = memref.load %arg3[%c0_2] : memref<3xf32, #tpu.memory_space<smem>>
    %5 = vector.broadcast %4 : f32 to vector<2x256xf32>
    %6 = arith.mulf %3, %5 : vector<2x256xf32>
    %7 = vector.shape_cast %6 : vector<2x256xf32> to vector<2x1x256xf32>
    %c0_3 = arith.constant 0 : index
    %c0_4 = arith.constant 0 : index
    %c0_5 = arith.constant 0 : index
    %8 = vector.load %arg5[%c0_3, %c0_4, %c0_5] : memref<2x3x256xf32, #tpu.memory_space<vmem>>, vector<2x1x256xf32>
    tpu.vector_store %arg5[%c0_3, %c0_4, %c0_5], %7 {strides = array<i32>} : memref<2x3x256xf32, #tpu.memory_space<vmem>>, vector<2x1x256xf32>,
    %c1 = arith.constant 1 : index
    %9 = memref.load %arg2[%c1] : memref<3xf32, #tpu.memory_space<smem>>
    %10 = vector.broadcast %9 : f32 to vector<2x256xf32>
    %11 = arith.subf %0, %10 : vector<2x256xf32>
    %c1_6 = arith.constant 1 : index
    %12 = memref.load %arg3[%c1_6] : memref<3xf32, #tpu.memory_space<smem>>
    %13 = vector.broadcast %12 : f32 to vector<2x256xf32>
    %14 = arith.mulf %11, %13 : vector<2x256xf32>
    %15 = vector.shape_cast %14 : vector<2x256xf32> to vector<2x1x256xf32>
    %c0_7 = arith.constant 0 : index
    %c1_8 = arith.constant 1 : index
    %c0_9 = arith.constant 0 : index
    %16 = vector.load %arg5[%c0_7, %c1_8, %c0_9] : memref<2x3x256xf32, #tpu.memory_space<vmem>>, vector<2x1x256xf32>
    tpu.vector_store %arg5[%c0_7, %c1_8, %c0_9], %15 {strides = array<i32>} : memref<2x3x256xf32, #tpu.memory_space<vmem>>, vector<2x1x256xf32>,
    %c2 = arith.constant 2 : index
    %17 = memref.load %arg2[%c2] : memref<3xf32, #tpu.memory_space<smem>>
    %18 = vector.broadcast %17 : f32 to vector<2x256xf32>
    %19 = arith.subf %0, %18 : vector<2x256xf32>
    %c2_10 = arith.constant 2 : index
    %20 = memref.load %arg3[%c2_10] : memref<3xf32, #tpu.memory_space<smem>>
    %21 = vector.broadcast %20 : f32 to vector<2x256xf32>
    %22 = arith.mulf %19, %21 : vector<2x256xf32>
    %23 = vector.shape_cast %22 : vector<2x256xf32> to vector<2x1x256xf32>
    %c0_11 = arith.constant 0 : index
    %c2_12 = arith.constant 2 : index
    %c0_13 = arith.constant 0 : index
    %24 = vector.load %arg5[%c0_11, %c2_12, %c0_13] : memref<2x3x256xf32, #tpu.memory_space<vmem>>, vector<2x1x256xf32>
    tpu.vector_store %arg5[%c0_11, %c2_12, %c0_13], %23 {strides = array<i32>} : memref<2x3x256xf32, #tpu.memory_space<vmem>>, vector<2x1x256xf32>,
    return
  }
  func.func @transform_0(%arg0: i32, %arg1: i32) -> i32 {
    %c0_i32 = arith.constant 0 : i32
    %c0_i32_0 = arith.constant 0 : i32
    return %c0_i32 : i32
  }
  func.func @transform_1(%arg0: i32, %arg1: i32) -> i32 {
    %c0_i32 = arith.constant 0 : i32
    %c0_i32_0 = arith.constant 0 : i32
    return %c0_i32 : i32
  }
  func.func @transform_2(%arg0: i32, %arg1: i32) -> (i32, i32) {
    %c0_i32 = arith.constant 0 : i32
    return %arg0, %arg1 : i32, i32
  }
  func.func @transform_3(%arg0: i32, %arg1: i32) -> (i32, i32, i32) {
    %c0_i32 = arith.constant 0 : i32
    %c0_i32_0 = arith.constant 0 : i32
    return %arg0, %c0_i32, %arg1 : i32, i32, i32
  }
}

</mosaic_0001>

<llo_original>
// kernel: tpu_custom_call.1
$region0: #{tpu_custom_call.1}
  #allocation0 [shape = 'u32[]', space=smem, size = 0x4, offset = 0x4, fixed_abs, tag = 'smem constant byte address 0x4 - core index']
  #allocation1 [shape = 'u32[144,128]{1,0:T(1,128)}', space=vmem, size = 0x12000, scoped, tag = 'internal scratch']
  %s0 = inlined_call_operand.hbm [shape: f32[3], index: 0, kind: input, shape index: {}]
  %s1 = inlined_call_operand.vmem [shape: f32[3], index: 1, kind: input, shape index: {}]
  %s2 = inlined_call_operand.hbm [shape: f32[2,256], index: 2, kind: input, shape index: {}]
  %s3 = inlined_call_operand.vmem [shape: f32[2,3,256], index: 3, kind: output, shape index: {}]
  %s4 = sld [smem:[#allocation0]]
  $region34: #{tpu_custom_call.1} parent=0
    _
  %s6 = ssub.s32 1, %s4
  %s7 = scalar_select 0, %s6, %s4
  $region1: #{tpu_custom_call.1} parent=0
    #allocation2 [shape = 'u8[512]{0}', space=smem, size = 0x200, scoped, tag = 'input window, operand 0, single buffered']
    #allocation3 [shape = 's32[1]{0}', space=sflag, size = 0x4, scoped, tag = 'scoped memory for tpu_custom_call.1']
    #allocation4 [shape = 's32[1]{0}', space=sflag, size = 0x4, scoped, tag = 'scoped memory for tpu_custom_call.1']
    #allocation5 [shape = 's32[1]{0}', space=sflag, size = 0x4, scoped, tag = 'scoped memory for tpu_custom_call.1']
    #allocation6 [shape = 'u8[512]{0}', space=smem, size = 0x200, scoped, tag = 'input window, operand 1, single buffered']
    #allocation7 [shape = 'u8[2048]{0}', space=vmem, size = 0x800, scoped, tag = 'input window, operand 2, single buffered']
    %8 = vsyncpa [#allocation4], 0
    %9 = vsyncpa [#allocation5], 0
    %10 = vsyncpa [#allocation3], 0
    // Predicated region
    $region2: #{tpu_custom_call.1} parent=1 // pred_check
      _
    $region3: #{tpu_custom_call.1} parent=1 // pred_check_branch
      %12 = sbr.rel (0) target = $region5
    $region4: #{tpu_custom_call.1} parent=1 // pred_region
      %s14 = ssub.s32 16, 16
      %15 = vsyncadd [#allocation4], %s14
      %18 = dma.hbm_to_smem %s0, 16, [#allocation2], [#allocation4]
    $region5: #{tpu_custom_call.1} parent=1 // pred_fallthru
      _
    // Predicated region
    $region6: #{tpu_custom_call.1} parent=1 // pred_check
      _
    $region7: #{tpu_custom_call.1} parent=1 // pred_check_branch
      %20 = sbr.rel (0) target = $region9
    $region8: #{tpu_custom_call.1} parent=1 // pred_region
      %s22 = ssub.s32 16, 16
      %23 = vsyncadd [#allocation5], %s22
      %s25 = sshll.u32 %s1, 4
      %s26 = int_to_ptr.vmem [resolvable:$true] %s25
      %28 = dma.vmem_to_smem %s26, 16, [#allocation6], [#allocation5]
    $region9: #{tpu_custom_call.1} parent=1 // pred_fallthru
      _
    // Predicated region
    $region10: #{tpu_custom_call.1} parent=1 // pred_check
      _
    $region11: #{tpu_custom_call.1} parent=1 // pred_check_branch
      %30 = sbr.rel (0) target = $region13
    $region12: #{tpu_custom_call.1} parent=1 // pred_region
      %s32 = ssub.s32 64, 64
      %33 = vsyncadd [#allocation3], %s32
      %s35 = sshll.u32 [#allocation7], 4
      %s36 = int_to_ptr.vmem [resolvable:$true] %s35
      %38 = dma.hbm_to_vmem [thread:$0]  %s2, 64, %s36, [#allocation3]
    $region13: #{tpu_custom_call.1} parent=1 // pred_fallthru
      _
    // Predicated region
    $region14: #{tpu_custom_call.1} parent=1 // pred_check
      _
    $region15: #{tpu_custom_call.1} parent=1 // pred_check_branch
      %40 = sbr.rel (0) target = $region17
    $region16: #{tpu_custom_call.1} parent=1 // pred_region
      %41 = dma.done [#allocation4], 16
    $region17: #{tpu_custom_call.1} parent=1 // pred_fallthru
      _
    // Predicated region
    $region18: #{tpu_custom_call.1} parent=1 // pred_check
      _
    $region19: #{tpu_custom_call.1} parent=1 // pred_check_branch
      %43 = sbr.rel (0) target = $region21
    $region20: #{tpu_custom_call.1} parent=1 // pred_region
      %44 = dma.done [#allocation5], 16
    $region21: #{tpu_custom_call.1} parent=1 // pred_fallthru
      _
    // Predicated region
    $region22: #{tpu_custom_call.1} parent=1 // pred_check
      _
    $region23: #{tpu_custom_call.1} parent=1 // pred_check_branch
      %46 = sbr.rel (0) target = $region25
    $region24: #{tpu_custom_call.1} parent=1 // pred_region
      %47 = dma.done [#allocation3], 64
    $region25: #{tpu_custom_call.1} parent=1 // pred_fallthru
      _
    %48 = sfence
    %v49 = vld [vmem:[#allocation7] sm:$0xf]
    %s50 = sld [smem:[#allocation2]]
    %v51 = vstv %s50
    %v52 = vsub.f32 %v49, %v51
    %s53 = sld [smem:[#allocation6]]
    %v54 = vstv %s53
    %v55 = vmul.f32 %v52, %v54
    %v58 = vunpack.c.l.s4 1966171168
    %v59 = vunpack.c.0.s8 %v58
    %v60 = vlaneseq
    %v61 = vshrl.u32 %v60, 7
    %v62 = vsub.s32 %v59, %v61
    %v63 = vrot.slane %v55, %v62
    %v64 = vcombine.high %v63, %v63
    %v67 = vlaneseq
    %vm68 = vcmp.ge.s32.totalorder %v67, 0
    %vm69 = vcmp.lt.s32.totalorder %v67, 256
    %vm70 = vmand %vm68, %vm69
    %71 = vst.msk [vmem:[%s3] ss:$4 sm:$0x3] %vm70, %v63
    %s72 = scalar_lea.vmem %s3, 8
    %73 = vst.msk [vmem:[%s72] ss:$4 sm:$0x3] %vm70, %v64
    %s74 = sld [smem:[#allocation2 + $0x1]]
    %v75 = vstv %s74
    %v76 = vsub.f32 %v49, %v75
    %s77 = sld [smem:[#allocation6 + $0x1]]
    %v78 = vstv %s77
    %v79 = vmul.f32 %v76, %v78
    %v82 = vunpack.c.l.s4 1966171168
    %v83 = vunpack.c.0.s8 %v82
    %v84 = vlaneseq
    %v85 = vshrl.u32 %v84, 7
    %v86 = vsub.s32 %v83, %v85
    %v87 = vrot.slane %v79, %v86
    %v88 = vcombine.high %v87, %v87
    %s91 = scalar_lea.vmem %s3, 1
    %92 = vst.msk [vmem:[%s91] ss:$4 sm:$0x3] %vm70, %v87
    %s93 = scalar_lea.vmem %s3, 9
    %94 = vst.msk [vmem:[%s93] ss:$4 sm:$0x3] %vm70, %v88
    %s95 = sld [smem:[#allocation2 + $0x2]]
    %v96 = vstv %s95
    %v97 = vsub.f32 %v49, %v96
    %s98 = sld [smem:[#allocation6 + $0x2]]
    %v99 = vstv %s98
    %v100 = vmul.f32 %v97, %v99
    %v103 = vunpack.c.l.s4 1966171168
    %v104 = vunpack.c.0.s8 %v103
    %v105 = vlaneseq
    %v106 = vshrl.u32 %v105, 7
    %v107 = vsub.s32 %v104, %v106
    %v108 = vrot.slane %v100, %v107
    %v109 = vcombine.high %v108, %v108
    %s112 = scalar_lea.vmem %s3, 2
    %113 = vst.msk [vmem:[%s112] ss:$4 sm:$0x3] %vm70, %v108
    %s114 = scalar_lea.vmem %s3, 10
    %115 = vst.msk [vmem:[%s114] ss:$4 sm:$0x3] %vm70, %v109
    // Predicated region
    $region26: #{tpu_custom_call.1} parent=1 // pred_check
      _
    $region27: #{tpu_custom_call.1} parent=1 // pred_check_branch
      %117 = sbr.rel (0) target = $region29
    $region28: #{tpu_custom_call.1} parent=1 // pred_region
      _
    $region29: #{tpu_custom_call.1} parent=1 // pred_fallthru
      _
    // Predicated region
    $region30: #{tpu_custom_call.1} parent=1 // pred_check
      _
    $region31: #{tpu_custom_call.1} parent=1 // pred_check_branch
      %119 = sbr.rel (0) target = $region33
    $region32: #{tpu_custom_call.1} parent=1 // pred_region
      _
    $region33: #{tpu_custom_call.1} parent=1 // pred_fallthru
      _
    %120 = vsyncpa [#allocation3], 1
    %121 = vsyncpa [#allocation4], 1
    %122 = vsyncpa [#allocation5], 1

</llo_original>
